<compile_context>
chip_gen: v7x
topology: tpu7x:2x2x1
jax: 0.10.0
libtpu: 0.0.40
codegen_flags: <defaults>
</compile_context>

<pallas_src>
import jax
import jax.numpy as jnp
from jax.experimental import pallas as pl
from jax.experimental.pallas import tpu as pltpu


def _se_kernel(x_ref, w1_ref, b1_ref, w2_ref, b2_ref, o_ref):
    x = x_ref[0]                                            # (C, t), native dtype
    # Squeeze -> excite matmuls (tiny weights, f32 accumulation on the MXU).
    h = jnp.dot(w1_ref[...], x, preferred_element_type=jnp.float32) + b1_ref[...]
    h = jnp.maximum(h, 0.0)                                 # ReLU
    z = jnp.dot(w2_ref[...], h, preferred_element_type=jnp.float32) + b2_ref[...]
    # sigmoid(z) == 0.5 * tanh(0.5 * z) + 0.5  -> one EUP op per element
    # (matters on v7x where the single EUP can become the next bottleneck).
    y = 0.5 * jnp.tanh(0.5 * z) + 0.5                       # (C, t) f32 gate
    o_ref[0] = (x * y).astype(o_ref.dtype)


def _cdiv(a, b):
    return (a + b - 1) // b


def _round_up(a, m):
    return _cdiv(a, m) * m


def _round_down_min(a, m):
    return max(m, (a // m) * m)


def _vmem_capacity_bytes():
    """Physical VMEM per TensorCore, with safe fallbacks."""
    try:
        return int(pltpu.get_tpu_info().vmem_capacity_bytes)
    except Exception:
        pass
    try:
        if "v7" in jax.devices()[0].device_kind.lower():
            return 64 * 1024 * 1024
    except Exception:
        pass
    return 128 * 1024 * 1024


def se_block1d_pallas(x_nchw, w1, b1, w2, b2, *, pixel_tile=32768):
    """x_nchw: (B, C, H, W). w1: (Cr, C) squeezed 1x1 conv1 weight, b1: (Cr,),
    w2: (C, Cr) squeezed 1x1 conv2 weight, b2: (C,)."""
    B, C, H, W = x_nchw.shape
    Cr = w1.shape[0]
    HW = H * W
    itemsize = jnp.dtype(x_nchw.dtype).itemsize

    # ---- generation-aware VMEM budget for the per-step working set -----------
    phys_vmem = _vmem_capacity_bytes()
    budget = min(64 * 1024 * 1024, (phys_vmem * 3) // 4)   # ~48 MiB v7x, 64 MiB v5e/v6e
    # Honest per-pixel footprint: double-buffered x tile + double-buffered out
    # tile (native dtype) + ~3 f32 (C, t) temporaries (gate, upcast, slack).
    per_pixel = C * (4 * itemsize + 3 * 4)
    t_cap = _round_down_min(budget // per_pixel, 128)

    # ---- pixel tile: lane-dense, big enough to amortize ~0.35us/step overhead -
    t = min(pixel_tile, _round_up(HW, 128), t_cap)
    t = max(t, 128)

    # Keep >= ~4 grid steps when the problem allows, so both v7x TensorCores and
    # the software pipeline have work.
    min_steps = 4
    if B * _cdiv(HW, 128) >= min_steps and B * _cdiv(HW, t) < min_steps:
        steps_per_b = _cdiv(min_steps, B)
        t = min(t, _round_down_min(HW // steps_per_b, 128))

    grid = (B, _cdiv(HW, t))

    # ---- operands -------------------------------------------------------------
    # Free view: pixels on lanes, channels on sublanes. No pad; Pallas masks the
    # ragged last pixel tile (OOB lanes never feed a cross-lane op, OOB writes
    # are dropped).
    x3d = x_nchw.reshape(B, C, HW)
    mxu_dtype = x_nchw.dtype if x_nchw.dtype == jnp.bfloat16 else jnp.float32
    w1_k = w1.astype(mxu_dtype)                      # matches x tile dtype on the MXU
    w2_k = w2.astype(jnp.float32)                    # second matmul runs on f32 h
    b1_k = b1.astype(jnp.float32).reshape(Cr, 1)
    b2_k = b2.astype(jnp.float32).reshape(C, 1)

    # NOTE: W/b BlockSpecs have constant index maps (resident, not re-DMA'd).
    # pipeline_mode=pl.Buffered(1) would save their second buffer, but at C=32
    # that is negligible VMEM, so it is left at the default for robustness.
    out3d = pl.pallas_call(
        _se_kernel,
        out_shape=jax.ShapeDtypeStruct((B, C, HW), x_nchw.dtype),
        grid_spec=pltpu.PrefetchScalarGridSpec(
            num_scalar_prefetch=0,
            grid=grid,
            in_specs=[
                pl.BlockSpec((1, C, t), lambda b, i: (b, 0, i)),   # x tile
                pl.BlockSpec((Cr, C), lambda b, i: (0, 0)),        # W1 (full)
                pl.BlockSpec((Cr, 1), lambda b, i: (0, 0)),        # b1
                pl.BlockSpec((C, Cr), lambda b, i: (0, 0)),        # W2 (full)
                pl.BlockSpec((C, 1), lambda b, i: (0, 0)),         # b2
            ],
            out_specs=pl.BlockSpec((1, C, t), lambda b, i: (b, 0, i)),
        ),
        compiler_params=pltpu.CompilerParams(
            dimension_semantics=("parallel", "parallel"),
            vmem_limit_bytes=int(min(phys_vmem, budget + (8 << 20))),
        ),
    )(x3d, w1_k, b1_k, w2_k, b2_k)

    return out3d.reshape(B, C, H, W)


def se_block1d_ref(x_nchw, w1, b1, w2, b2):
    """Pure-JAX reference matching the PyTorch forward."""
    xf = x_nchw.astype(jnp.float32)
    h = jnp.einsum("bchw,oc->bohw", xf, w1.astype(jnp.float32)) \
        + b1.astype(jnp.float32)[None, :, None, None]
    h = jnp.maximum(h, 0.0)
    z = jnp.einsum("bchw,oc->bohw", h, w2.astype(jnp.float32)) \
        + b2.astype(jnp.float32)[None, :, None, None]
    y = jax.nn.sigmoid(z)
    return (xf * y).astype(x_nchw.dtype)


if __name__ == "__main__":
    # Small shapes consistent with the module: channel=32, reduction=8.
    B, C, H, W = 2, 32, 16, 16
    reduction = 8
    Cr = C // reduction

    key = jax.random.PRNGKey(0)
    kx, kw1, kb1, kw2, kb2 = jax.random.split(key, 5)

    x = jax.random.normal(kx, (B, C, H, W), dtype=jnp.float32)

    # Deterministic synthetic parameters (Conv2d 1x1 weights, squeezed).
    w1 = jax.random.normal(kw1, (Cr, C), dtype=jnp.float32) * 0.1   # conv1 weight
    b1 = jax.random.normal(kb1, (Cr,), dtype=jnp.float32) * 0.1     # conv1 bias
    w2 = jax.random.normal(kw2, (C, Cr), dtype=jnp.float32) * 0.1   # conv2 weight
    b2 = jax.random.normal(kb2, (C,), dtype=jnp.float32) * 0.1      # conv2 bias

    out = se_block1d_pallas(x, w1, b1, w2, b2)
    out = jax.block_until_ready(out)

    ref = se_block1d_ref(x, w1, b1, w2, b2)
    assert out.shape == x.shape and out.dtype == x.dtype
    assert jnp.allclose(out, ref, atol=1e-5, rtol=1e-5), "mismatch vs reference"

    print("KERNEL_OK")
</pallas_src>

<mosaic_0001>
module attributes {stable_mosaic.version = 11 : i64} {
  func.func @_se_kernel(%arg0: i32, %arg1: i32, %arg2: memref<1x32x128xf32, #tpu.memory_space<vmem>>, %arg3: memref<4x32xf32, #tpu.memory_space<vmem>>, %arg4: memref<4x1xf32, #tpu.memory_space<vmem>>, %arg5: memref<32x4xf32, #tpu.memory_space<vmem>>, %arg6: memref<32x1xf32, #tpu.memory_space<vmem>>, %arg7: memref<1x32x128xf32, #tpu.memory_space<vmem>>) attributes {dimension_semantics = [#tpu.dimension_semantics<parallel>, #tpu.dimension_semantics<parallel>], iteration_bounds = array<i64: 2, 2>, scalar_prefetch = 0 : i64, scratch_operands = 0 : i64, tpu.core_type = #tpu.core_type<tc>, window_params = [{transform_indices = @transform_0, window_bounds = array<i64: 1, 32, 128>}, {pipeline_mode = #tpu.pipeline_mode<synchronous>, transform_indices = @transform_1, window_bounds = array<i64: 4, 32>}, {pipeline_mode = #tpu.pipeline_mode<synchronous>, transform_indices = @transform_2, window_bounds = array<i64: 4, 1>}, {pipeline_mode = #tpu.pipeline_mode<synchronous>, transform_indices = @transform_3, window_bounds = array<i64: 32, 4>}, {pipeline_mode = #tpu.pipeline_mode<synchronous>, transform_indices = @transform_4, window_bounds = array<i64: 32, 1>}, {transform_indices = @transform_5, window_bounds = array<i64: 1, 32, 128>}]} {
    %c0 = arith.constant 0 : index
    %c0_0 = arith.constant 0 : index
    %c0_1 = arith.constant 0 : index
    %0 = vector.load %arg2[%c0, %c0_0, %c0_1] : memref<1x32x128xf32, #tpu.memory_space<vmem>>, vector<1x32x128xf32>
    %1 = vector.shape_cast %0 : vector<1x32x128xf32> to vector<32x128xf32>
    %c0_2 = arith.constant 0 : index
    %c0_3 = arith.constant 0 : index
    %2 = vector.load %arg3[%c0_2, %c0_3] : memref<4x32xf32, #tpu.memory_space<vmem>>, vector<4x32xf32>
    %cst = arith.constant dense<0.000000e+00> : vector<4x128xf32>
    %3 = tpu.matmul %2, %1, %cst {dimension_numbers = #tpu.dot_dimension_numbers<[1], [0], [0], [1], [0, 0, 1, 1], [], []>} : vector<4x32xf32>, vector<32x128xf32>, vector<4x128xf32> -> vector<4x128xf32>
    %c0_4 = arith.constant 0 : index
    %c0_5 = arith.constant 0 : index
    %4 = vector.load %arg4[%c0_4, %c0_5] : memref<4x1xf32, #tpu.memory_space<vmem>>, vector<4x1xf32>
    %5 = vector.broadcast %4 : vector<4x1xf32> to vector<4x128xf32>
    %6 = arith.addf %3, %5 : vector<4x128xf32>
    %cst_6 = arith.constant 0.000000e+00 : f32
    %7 = vector.broadcast %cst_6 : f32 to vector<4x128xf32>
    %8 = arith.maximumf %6, %7 : vector<4x128xf32>
    %c0_7 = arith.constant 0 : index
    %c0_8 = arith.constant 0 : index
    %9 = vector.load %arg5[%c0_7, %c0_8] : memref<32x4xf32, #tpu.memory_space<vmem>>, vector<32x4xf32>
    %cst_9 = arith.constant dense<0.000000e+00> : vector<32x128xf32>
    %10 = tpu.matmul %9, %8, %cst_9 {dimension_numbers = #tpu.dot_dimension_numbers<[1], [0], [0], [1], [0, 0, 1, 1], [], []>} : vector<32x4xf32>, vector<4x128xf32>, vector<32x128xf32> -> vector<32x128xf32>
    %c0_10 = arith.constant 0 : index
    %c0_11 = arith.constant 0 : index
    %11 = vector.load %arg6[%c0_10, %c0_11] : memref<32x1xf32, #tpu.memory_space<vmem>>, vector<32x1xf32>
    %12 = vector.broadcast %11 : vector<32x1xf32> to vector<32x128xf32>
    %13 = arith.addf %10, %12 : vector<32x128xf32>
    %cst_12 = arith.constant 5.000000e-01 : f32
    %14 = vector.broadcast %cst_12 : f32 to vector<32x128xf32>
    %15 = arith.mulf %14, %13 : vector<32x128xf32>
    %16 = math.tanh %15 : vector<32x128xf32>
    %cst_13 = arith.constant 5.000000e-01 : f32
    %17 = vector.broadcast %cst_13 : f32 to vector<32x128xf32>
    %18 = arith.mulf %17, %16 : vector<32x128xf32>
    %cst_14 = arith.constant 5.000000e-01 : f32
    %19 = vector.broadcast %cst_14 : f32 to vector<32x128xf32>
    %20 = arith.addf %18, %19 : vector<32x128xf32>
    %21 = arith.mulf %1, %20 : vector<32x128xf32>
    %c0_15 = arith.constant 0 : index
    %c0_16 = arith.constant 0 : index
    %c0_17 = arith.constant 0 : index
    %22 = vector.load %arg7[%c0_15, %c0_16, %c0_17] : memref<1x32x128xf32, #tpu.memory_space<vmem>>, vector<1x32x128xf32>
    %23 = vector.shape_cast %22 : vector<1x32x128xf32> to vector<32x128xf32>
    %24 = vector.shape_cast %21 : vector<32x128xf32> to vector<1x32x128xf32>
    tpu.vector_store %arg7[%c0_15, %c0_16, %c0_17], %24 {strides = array<i32>} : memref<1x32x128xf32, #tpu.memory_space<vmem>>, vector<1x32x128xf32>,
    return
  }
  func.func @transform_0(%arg0: i32, %arg1: i32) -> (i32, i32, i32) {
    %c0_i32 = arith.constant 0 : i32
    %c0_i32_0 = arith.constant 0 : i32
    return %arg0, %c0_i32, %arg1 : i32, i32, i32
  }
  func.func @transform_1(%arg0: i32, %arg1: i32) -> (i32, i32) {
    %c0_i32 = arith.constant 0 : i32
    %c0_i32_0 = arith.constant 0 : i32
    %c0_i32_1 = arith.constant 0 : i32
    return %c0_i32, %c0_i32_0 : i32, i32
  }
  func.func @transform_2(%arg0: i32, %arg1: i32) -> (i32, i32) {
    %c0_i32 = arith.constant 0 : i32
    %c0_i32_0 = arith.constant 0 : i32
    %c0_i32_1 = arith.constant 0 : i32
    return %c0_i32, %c0_i32_0 : i32, i32
  }
  func.func @transform_3(%arg0: i32, %arg1: i32) -> (i32, i32) {
    %c0_i32 = arith.constant 0 : i32
    %c0_i32_0 = arith.constant 0 : i32
    %c0_i32_1 = arith.constant 0 : i32
    return %c0_i32, %c0_i32_0 : i32, i32
  }
  func.func @transform_4(%arg0: i32, %arg1: i32) -> (i32, i32) {
    %c0_i32 = arith.constant 0 : i32
    %c0_i32_0 = arith.constant 0 : i32
    %c0_i32_1 = arith.constant 0 : i32
    return %c0_i32, %c0_i32_0 : i32, i32
  }
  func.func @transform_5(%arg0: i32, %arg1: i32) -> (i32, i32, i32) {
    %c0_i32 = arith.constant 0 : i32
    %c0_i32_0 = arith.constant 0 : i32
    return %arg0, %c0_i32, %arg1 : i32, i32, i32
  }
}

</mosaic_0001>

<llo_original>
// kernel: tpu_custom_call.1
$region0: #{tpu_custom_call.1}
  #allocation0 [shape = 'u32[]', space=smem, size = 0x4, offset = 0x4, fixed_abs, tag = 'smem constant byte address 0x4 - core index']
  #allocation1 [shape = 'u32[144,128]{1,0:T(1,128)}', space=vmem, size = 0x12000, scoped, tag = 'internal scratch']
  %s0 = inlined_call_operand.hbm [shape: f32[2,32,256], index: 0, kind: input, shape index: {}]
  %s1 = inlined_call_operand.hbm [shape: f32[4,32], index: 1, kind: input, shape index: {}]
  %s2 = inlined_call_operand.hbm [shape: f32[4,1], index: 2, kind: input, shape index: {}]
  %s3 = inlined_call_operand.hbm [shape: f32[32,4], index: 3, kind: input, shape index: {}]
  %s4 = inlined_call_operand.hbm [shape: f32[32,1], index: 4, kind: input, shape index: {}]
  %s5 = inlined_call_operand.hbm [shape: f32[2,32,256], index: 5, kind: output, shape index: {}]
  %s6 = sld [smem:[#allocation0]]
  $region73: #{tpu_custom_call.1} parent=0
    _
  %s8 = ssub.s32 1, %s6
  %s9 = scalar_select 0, %s8, %s6
  $region1: #{tpu_custom_call.1} parent=0
    #allocation2 [shape = 'u8[32768]{0}', space=vmem, size = 0x8000, scoped, tag = 'input window, operand 0']
    #allocation3 [shape = 's32[2]{0}', space=sflag, size = 0x8, scoped, tag = 'scoped memory for tpu_custom_call.1']
    #allocation4 [shape = 's32[2]{0}', space=sflag, size = 0x8, scoped, tag = 'scoped memory for tpu_custom_call.1']
    #allocation5 [shape = 'u8[2048]{0}', space=vmem, size = 0x800, scoped, tag = 'input window, operand 1, single buffered']
    #allocation6 [shape = 's32[1]{0}', space=sflag, size = 0x4, scoped, tag = 'scoped memory for tpu_custom_call.1']
    #allocation7 [shape = 'u8[2048]{0}', space=vmem, size = 0x800, scoped, tag = 'input window, operand 2, single buffered']
    #allocation8 [shape = 'u8[16384]{0}', space=vmem, size = 0x4000, scoped, tag = 'input window, operand 3, single buffered']
    #allocation9 [shape = 's32[1]{0}', space=sflag, size = 0x4, scoped, tag = 'scoped memory for tpu_custom_call.1']
    #allocation10 [shape = 'u8[16384]{0}', space=vmem, size = 0x4000, scoped, tag = 'input window, operand 4, single buffered']
    #allocation11 [shape = 'u8[32768]{0}', space=vmem, size = 0x8000, scoped, tag = 'output window, operand 0']
    %10 = vsyncpa [#allocation3], 0
    %s11 = scalar_lea.sflag [#allocation3], 1
    %12 = vsyncpa %s11, 0
    %13 = vsyncpa [#allocation6], 0
    %14 = vsyncpa [#allocation9], 0
    %15 = vsyncpa [#allocation4], 0
    %s16 = scalar_lea.sflag [#allocation4], 1
    %17 = vsyncpa %s16, 0
    loop: start=0, step=1, limit=6
    $region2: #{tpu_custom_call.1} parent=1 // loop_pre_header
      _
    $region3: #{tpu_custom_call.1} parent=1 // loop_header
      %s19 = sphi 0, %s23
      %p20 = scmp.ge.s32.totalorder %s19, 6
      %s26 = sphi 0, %s38
      %s27 = sphi 0, %s34
      %s28 = sphi 0, %s26
      %s29 = sphi 0, %s27
      %s30 = sphi 0, %s28
      %s31 = sphi 0, %s29
      %s43 = sphi 0, %s45
      %s46 = sphi 0, %s43
      %s47 = sphi 0, %s46
      %s63 = sphi 0, %s47
      %s67 = sphi 0, %s67
      %s69 = sphi 0, %s67
      %s70 = sphi 0, %s69
      %s84 = sphi 0, %s70
      %s88 = sphi 0, %s88
      %s90 = sphi 0, %s88
      %s91 = sphi 0, %s90
      %s105 = sphi 0, %s91
      %s109 = sphi 0, %s109
      %s111 = sphi 0, %s109
      %s112 = sphi 0, %s111
      %s126 = sphi 0, %s112
      %s130 = sphi 0, %s130
      %s132 = sphi 0, %s130
      %s133 = sphi 0, %s132
      %s147 = sphi 0, %s133
      %s155 = sphi 0, %s157
      %s158 = sphi 0, %s155
      %s159 = sphi 0, %s158
      %s175 = sphi 0, %s159
    $region4: #{tpu_custom_call.1} parent=1 // loop_header_branch
      %22 = sbr.rel (%p20) target = $region8
    $region5: #{tpu_custom_call.1} parent=1 // loop_body
      %s24 = ssub.s32 %s19, 1
      %s25 = ssub.s32 %s19, 2
      %s32 = sadd.s32 1, %s27
      %p33 = scmp.ge.s32.totalorder %s32, 2
      %s34 = scalar_select %p33, 0, %s32
      %s35 = sadd.s32 1, %s26
      %s36 = scalar_select %p33, %s35, %s26
      %p37 = scmp.ge.s32.totalorder %s36, 2
      %s38 = scalar_select %p37, 0, %s36
      %s39 = ssub.s32 %s26, %s38
      %s40 = ssub.s32 %s27, %s34
      %s41 = sor.u32 %s39, %s40
      %p42 = scmp.eq.s32.totalorder %s41, 0
      %s44 = sadd.s32 %s43, 1
      %s45 = scalar_select %p42, %s43, %s44
      %p48 = pneg %p42
      %p49 = scmp.eq.s32.totalorder %s19, 3
      %p50 = por %p48, %p49
      %p51 = scmp.ne.s32.totalorder %s43, %s46
      %p52 = scmp.eq.s32.totalorder %s19, 0
      %p53 = por %p51, %p52
      %p54 = scmp.ne.s32.totalorder %s43, %s46
      %p55 = scmp.eq.s32.totalorder %s24, 3
      %p56 = por %p54, %p55
      %p57 = scmp.ne.s32.totalorder %s46, %s47
      %p58 = scmp.eq.s32.totalorder %s24, 0
      %p59 = por %p57, %p58
      %p60 = scmp.ne.s32.totalorder %s46, %s47
      %p61 = scmp.eq.s32.totalorder %s25, 3
      %p62 = por %p60, %p61
      %p64 = scmp.ne.s32.totalorder %s47, %s63
      %p65 = scmp.eq.s32.totalorder %s25, 0
      %p66 = por %p64, %p65
      %s68 = sadd.s32 %s67, 1
      %p71 = scmp.eq.s32.totalorder %s19, 3
      %p72 = scmp.ne.s32.totalorder %s67, %s69
      %p73 = scmp.eq.s32.totalorder %s19, 0
      %p74 = por %p72, %p73
      %p75 = scmp.ne.s32.totalorder %s67, %s69
      %p76 = scmp.eq.s32.totalorder %s24, 3
      %p77 = por %p75, %p76
      %p78 = scmp.ne.s32.totalorder %s69, %s70
      %p79 = scmp.eq.s32.totalorder %s24, 0
      %p80 = por %p78, %p79
      %p81 = scmp.ne.s32.totalorder %s69, %s70
      %p82 = scmp.eq.s32.totalorder %s25, 3
      %p83 = por %p81, %p82
      %p85 = scmp.ne.s32.totalorder %s70, %s84
      %p86 = scmp.eq.s32.totalorder %s25, 0
      %p87 = por %p85, %p86
      %s89 = sadd.s32 %s88, 1
      %p92 = scmp.eq.s32.totalorder %s19, 3
      %p93 = scmp.ne.s32.totalorder %s88, %s90
      %p94 = scmp.eq.s32.totalorder %s19, 0
      %p95 = por %p93, %p94
      %p96 = scmp.ne.s32.totalorder %s88, %s90
      %p97 = scmp.eq.s32.totalorder %s24, 3
      %p98 = por %p96, %p97
      %p99 = scmp.ne.s32.totalorder %s90, %s91
      %p100 = scmp.eq.s32.totalorder %s24, 0
      %p101 = por %p99, %p100
      %p102 = scmp.ne.s32.totalorder %s90, %s91
      %p103 = scmp.eq.s32.totalorder %s25, 3
      %p104 = por %p102, %p103
      %p106 = scmp.ne.s32.totalorder %s91, %s105
      %p107 = scmp.eq.s32.totalorder %s25, 0
      %p108 = por %p106, %p107
      %s110 = sadd.s32 %s109, 1
      %p113 = scmp.eq.s32.totalorder %s19, 3
      %p114 = scmp.ne.s32.totalorder %s109, %s111
      %p115 = scmp.eq.s32.totalorder %s19, 0
      %p116 = por %p114, %p115
      %p117 = scmp.ne.s32.totalorder %s109, %s111
      %p118 = scmp.eq.s32.totalorder %s24, 3
      %p119 = por %p117, %p118
      %p120 = scmp.ne.s32.totalorder %s111, %s112
      %p121 = scmp.eq.s32.totalorder %s24, 0
      %p122 = por %p120, %p121
      %p123 = scmp.ne.s32.totalorder %s111, %s112
      %p124 = scmp.eq.s32.totalorder %s25, 3
      %p125 = por %p123, %p124
      %p127 = scmp.ne.s32.totalorder %s112, %s126
      %p128 = scmp.eq.s32.totalorder %s25, 0
      %p129 = por %p127, %p128
      %s131 = sadd.s32 %s130, 1
      %p134 = scmp.eq.s32.totalorder %s19, 3
      %p135 = scmp.ne.s32.totalorder %s130, %s132
      %p136 = scmp.eq.s32.totalorder %s19, 0
      %p137 = por %p135, %p136
      %p138 = scmp.ne.s32.totalorder %s130, %s132
      %p139 = scmp.eq.s32.totalorder %s24, 3
      %p140 = por %p138, %p139
      %p141 = scmp.ne.s32.totalorder %s132, %s133
      %p142 = scmp.eq.s32.totalorder %s24, 0
      %p143 = por %p141, %p142
      %p144 = scmp.ne.s32.totalorder %s132, %s133
      %p145 = scmp.eq.s32.totalorder %s25, 3
      %p146 = por %p144, %p145
      %p148 = scmp.ne.s32.totalorder %s133, %s147
      %p149 = scmp.eq.s32.totalorder %s25, 0
      %p150 = por %p148, %p149
      %s151 = ssub.s32 %s26, %s38
      %s152 = ssub.s32 %s27, %s34
      %s153 = sor.u32 %s151, %s152
      %p154 = scmp.eq.s32.totalorder %s153, 0
      %s156 = sadd.s32 %s155, 1
      %s157 = scalar_select %p154, %s155, %s156
      %p160 = pneg %p154
      %p161 = scmp.eq.s32.totalorder %s19, 3
      %p162 = por %p160, %p161
      %p163 = scmp.ne.s32.totalorder %s155, %s158
      %p164 = scmp.eq.s32.totalorder %s19, 0
      %p165 = por %p163, %p164
      %p166 = scmp.ne.s32.totalorder %s155, %s158
      %p167 = scmp.eq.s32.totalorder %s24, 3
      %p168 = por %p166, %p167
      %p169 = scmp.ne.s32.totalorder %s158, %s159
      %p170 = scmp.eq.s32.totalorder %s24, 0
      %p171 = por %p169, %p170
      %p172 = scmp.ne.s32.totalorder %s158, %s159
      %p173 = scmp.eq.s32.totalorder %s25, 3
      %p174 = por %p172, %p173
      %p176 = scmp.ne.s32.totalorder %s159, %s175
      %p177 = scmp.eq.s32.totalorder %s25, 0
      %p178 = por %p176, %p177
      %p179 = scmp.le.s32.totalorder 1, %s19
      %p180 = scmp.lt.s32.totalorder %s19, 5
      %p181 = pnand %p179, %p180
      %p182 = pneg %p181
      // Predicated region
      $region9: #{tpu_custom_call.1} parent=5 // pred_check
        _
      $region10: #{tpu_custom_call.1} parent=5 // pred_check_branch
        %184 = sbr.rel (%p181) target = $region12
      $region11: #{tpu_custom_call.1} parent=5 // pred_region
        %s185 = ssub.s32 %s19, 1
        // Predicated region
        $region13: #{tpu_custom_call.1} parent=11 // pred_check
          %p186 = pneg %p80
        $region14: #{tpu_custom_call.1} parent=11 // pred_check_branch
          %188 = sbr.rel (%p186) target = $region16
        $region15: #{tpu_custom_call.1} parent=11 // pred_region
          %s190 = ssub.s32 64, 64
          %191 = vsyncadd [#allocation6], %s190
          %s193 = sshll.u32 [#allocation5], 4
          %s194 = int_to_ptr.vmem [resolvable:$true] %s193
          %196 = dma.hbm_to_vmem [thread:$0]  %s1, 64, %s194, [#allocation6]
        $region16: #{tpu_custom_call.1} parent=11 // pred_fallthru
          _
        // Predicated region
        $region17: #{tpu_custom_call.1} parent=11 // pred_check
          %p197 = pneg %p101
        $region18: #{tpu_custom_call.1} parent=11 // pred_check_branch
          %199 = sbr.rel (%p197) target = $region20
        $region19: #{tpu_custom_call.1} parent=11 // pred_region
          %s201 = ssub.s32 64, 64
          %202 = vsyncadd [#allocation6], %s201
          %s204 = sshll.u32 [#allocation7], 4
          %s205 = int_to_ptr.vmem [resolvable:$true] %s204
          %207 = dma.hbm_to_vmem [thread:$0]  %s2, 64, %s205, [#allocation6]
        $region20: #{tpu_custom_call.1} parent=11 // pred_fallthru
          _
        // Predicated region
        $region21: #{tpu_custom_call.1} parent=11 // pred_check
          %p208 = pneg %p122
        $region22: #{tpu_custom_call.1} parent=11 // pred_check_branch
          %210 = sbr.rel (%p208) target = $region24
        $region23: #{tpu_custom_call.1} parent=11 // pred_region
          %s212 = ssub.s32 512, 512
          %213 = vsyncadd [#allocation9], %s212
          %s214 = sshll.u32 [#allocation8], 4
          %s215 = int_to_ptr.vmem [resolvable:$true] %s214
          %220 = dma.hbm_to_vmem [thread:$0]  %s3, 512, %s215, [#allocation9], 128, 128, 8
        $region24: #{tpu_custom_call.1} parent=11 // pred_fallthru
          _
        // Predicated region
        $region25: #{tpu_custom_call.1} parent=11 // pred_check
          %p221 = pneg %p143
        $region26: #{tpu_custom_call.1} parent=11 // pred_check_branch
          %223 = sbr.rel (%p221) target = $region28
        $region27: #{tpu_custom_call.1} parent=11 // pred_region
          %s225 = ssub.s32 512, 512
          %226 = vsyncadd [#allocation9], %s225
          %s227 = sshll.u32 [#allocation10], 4
          %s228 = int_to_ptr.vmem [resolvable:$true] %s227
          %233 = dma.hbm_to_vmem [thread:$0]  %s4, 512, %s228, [#allocation9], 128, 128, 8
        $region28: #{tpu_custom_call.1} parent=11 // pred_fallthru
          _
      $region12: #{tpu_custom_call.1} parent=5 // pred_fallthru
        _
      %p234 = scmp.lt.s32.totalorder %s19, 4
      // Predicated region
      $region29: #{tpu_custom_call.1} parent=5 // pred_check
        %p235 = pneg %p234
      $region30: #{tpu_custom_call.1} parent=5 // pred_check_branch
        %237 = sbr.rel (%p235) target = $region32
      $region31: #{tpu_custom_call.1} parent=5 // pred_region
        // Predicated region
        $region33: #{tpu_custom_call.1} parent=31 // pred_check
          %p238 = pneg %p53
        $region34: #{tpu_custom_call.1} parent=31 // pred_check_branch
          %240 = sbr.rel (%p238) target = $region36
        $region35: #{tpu_custom_call.1} parent=31 // pred_region
          %s241 = sand.u32 %s43, 1
          %s242 = scalar_lea.sflag [#allocation3], %s241
          %s243 = sand.u32 %s43, 1
          %s244 = smul.addr %s243, 32
          %s245 = scalar_lea.vmem [#allocation2], %s244
          %s247 = ssub.s32 512, 512
          %248 = vsyncadd %s242, %s247
          %s249 = smul.addr %s26, 8
          %s250 = sadd.s32 %s27, %s249
          %s251 = smul.addr %s250, 128
          %s252 = scalar_lea.hbm %s0, %s251
          %s253 = sshll.u32 %s245, 4
          %s254 = int_to_ptr.vmem [resolvable:$true] %s253
          %259 = dma.hbm_to_vmem [thread:$0]  %s252, 512, %s254, %s242, 256, 128, 8
        $region36: #{tpu_custom_call.1} parent=31 // pred_fallthru
          _
      $region32: #{tpu_custom_call.1} parent=5 // pred_fallthru
        _
      %p260 = scmp.le.s32.totalorder 1, %s19
      %p261 = scmp.lt.s32.totalorder %s19, 5
      %p262 = pnand %p260, %p261
      %p263 = pneg %p262
      // Predicated region
      $region37: #{tpu_custom_call.1} parent=5 // pred_check
        _
      $region38: #{tpu_custom_call.1} parent=5 // pred_check_branch
        %265 = sbr.rel (%p262) target = $region40
      $region39: #{tpu_custom_call.1} parent=5 // pred_region
        %s266 = ssub.s32 %s19, 1
        %s267 = sand.u32 %s46, 1
        %s268 = scalar_lea.sflag [#allocation3], %s267
        %s269 = sand.u32 %s46, 1
        %s270 = smul.addr %s269, 32
        %s271 = scalar_lea.vmem [#allocation2], %s270
        // Predicated region
        $region41: #{tpu_custom_call.1} parent=39 // pred_check
          %p272 = pneg %p59
        $region42: #{tpu_custom_call.1} parent=39 // pred_check_branch
          %274 = sbr.rel (%p272) target = $region44
        $region43: #{tpu_custom_call.1} parent=39 // pred_region
          %275 = dma.done %s268, 512
        $region44: #{tpu_custom_call.1} parent=39 // pred_fallthru
          _
        // Predicated region
        $region45: #{tpu_custom_call.1} parent=39 // pred_check
          %p276 = pneg %p80
        $region46: #{tpu_custom_call.1} parent=39 // pred_check_branch
          %278 = sbr.rel (%p276) target = $region48
        $region47: #{tpu_custom_call.1} parent=39 // pred_region
          %279 = dma.done [#allocation6], 64
        $region48: #{tpu_custom_call.1} parent=39 // pred_fallthru
          _
        // Predicated region
        $region49: #{tpu_custom_call.1} parent=39 // pred_check
          %p280 = pneg %p101
        $region50: #{tpu_custom_call.1} parent=39 // pred_check_branch
          %282 = sbr.rel (%p280) target = $region52
        $region51: #{tpu_custom_call.1} parent=39 // pred_region
          %283 = dma.done [#allocation6], 64
        $region52: #{tpu_custom_call.1} parent=39 // pred_fallthru
          _
        // Predicated region
        $region53: #{tpu_custom_call.1} parent=39 // pred_check
          %p284 = pneg %p122
        $region54: #{tpu_custom_call.1} parent=39 // pred_check_branch
          %286 = sbr.rel (%p284) target = $region56
        $region55: #{tpu_custom_call.1} parent=39 // pred_region
          %287 = dma.done [#allocation9], 512
        $region56: #{tpu_custom_call.1} parent=39 // pred_fallthru
          _
        // Predicated region
        $region57: #{tpu_custom_call.1} parent=39 // pred_check
          %p288 = pneg %p143
        $region58: #{tpu_custom_call.1} parent=39 // pred_check_branch
          %290 = sbr.rel (%p288) target = $region60
        $region59: #{tpu_custom_call.1} parent=39 // pred_region
          %291 = dma.done [#allocation9], 512
        $region60: #{tpu_custom_call.1} parent=39 // pred_fallthru
          _
        %s292 = sand.u32 %s46, 1
        %s293 = scalar_lea.sflag [#allocation3], %s292
        %s294 = sand.u32 %s46, 1
        %s295 = smul.addr %s294, 32
        %s296 = scalar_lea.vmem [#allocation2], %s295
        %p297 = pneg %p59
        %p298 = pneg %p56
        %p299 = pneg %p80
        %p300 = pneg %p77
        %p301 = pneg %p101
        %p302 = pneg %p98
        %p303 = pneg %p122
        %p304 = pneg %p119
        %p305 = pneg %p143
        %p306 = pneg %p140
        %p307 = pneg %p171
        %p308 = pneg %p168
        %s309 = sand.u32 %s158, 1
        %s310 = scalar_lea.sflag [#allocation4], %s309
        %s311 = sand.u32 %s158, 1
        %s312 = smul.addr %s311, 32
        %s313 = scalar_lea.vmem [#allocation11], %s312
        %v314 = vld [vmem:[%s271] sm:$0xff]
        %v315 = vld [vmem:[%s271 + $0x8] sm:$0xff]
        %v316 = vld [vmem:[%s271 + $0x10] sm:$0xff]
        %v317 = vld [vmem:[%s271 + $0x18] sm:$0xff]
        %v318 = vld [vmem:[#allocation5] sm:$0xf]
        %v319 = vld [vmem:[#allocation7] sm:$0xf]
        %321 = vset.pattern.permute.xlu0 0
        %322 = vperm.xlu0 %321, %v319
        %v323 = vpop.permute.xlu0 %322
        %vm325 = vcmask 261120
        %v327 = vsel %vm325, %v318, 0
        %329 = vmatprep.subr.mxu0 0.0
        %330 = vmatpush1.msra.mxu0 %v314
        %331 = vmatprep.subr.mxu0 0.0
        %332 = vmatpush1.msra.mxu0 %v315
        %333 = vmatprep.subr.mxu0 0.0
        %334 = vmatpush1.msra.mxu0 %v316
        %335 = vmatprep.subr.mxu0 0.0
        %336 = vmatpush1.msra.mxu0 %v317
        %337 = vmatprep.subr.mxu0 0.0
        %338 = vmatpush1.msra.mxu0 0.0
        %339 = vmatprep.subr.mxu0 0.0
        %340 = vmatpush1.msra.mxu0 0.0
        %341 = vmatprep.subr.mxu0 0.0
        %342 = vmatpush1.msra.mxu0 0.0
        %343 = vmatprep.subr.mxu0 0.0
        %344 = vmatpush1.msra.mxu0 0.0
        %345 = vmatprep.subr.mxu0 0.0
        %346 = vmatpush1.msra.mxu0 0.0
        %347 = vmatprep.subr.mxu0 0.0
        %348 = vmatpush1.msra.mxu0 0.0
        %349 = vmatprep.subr.mxu0 0.0
        %350 = vmatpush1.msra.mxu0 0.0
        %351 = vmatprep.subr.mxu0 0.0
        %352 = vmatpush1.msra.mxu0 0.0
        %353 = vmatprep.subr.mxu0 0.0
        %354 = vmatpush1.msra.mxu0 0.0
        %355 = vmatprep.subr.mxu0 0.0
        %356 = vmatpush1.msra.mxu0 0.0
        %357 = vmatprep.subr.mxu0 0.0
        %358 = vmatpush1.msra.mxu0 0.0
        %359 = vmatprep.subr.mxu0 0.0
        %360 = vmatpush1.msra.mxu0 0.0
        %361 = vmatprep.subr.mxu0 0.0
        %362 = vmatpush1.msra.mxu0 0.0
        %363 = vmatprep.subr.mxu0 0.0
        %364 = vmatpush1.msra.mxu0 0.0
        %365 = vmatprep.subr.mxu0 0.0
        %366 = vmatpush1.msra.mxu0 0.0
        %367 = vmatprep.subr.mxu0 0.0
        %368 = vmatpush1.msra.mxu0 0.0
        %369 = vmatprep.subr.mxu0 0.0
        %370 = vmatpush1.msra.mxu0 0.0
        %371 = vmatprep.subr.mxu0 0.0
        %372 = vmatpush1.msra.mxu0 0.0
        %373 = vmatprep.subr.mxu0 0.0
        %374 = vmatpush1.msra.mxu0 0.0
        %375 = vmatprep.subr.mxu0 0.0
        %376 = vmatpush1.msra.mxu0 0.0
        %377 = vmatprep.subr.mxu0 0.0
        %378 = vmatpush1.msra.mxu0 0.0
        %379 = vmatprep.subr.mxu0 0.0
        %380 = vmatpush1.msra.mxu0 0.0
        %381 = vmatprep.subr.mxu0 0.0
        %382 = vmatpush1.msra.mxu0 0.0
        %383 = vmatprep.subr.mxu0 0.0
        %384 = vmatpush1.msra.mxu0 0.0
        %385 = vmatprep.subr.mxu0 0.0
        %386 = vmatpush1.msra.mxu0 0.0
        %387 = vmatprep.subr.mxu0 0.0
        %388 = vmatpush1.msra.mxu0 0.0
        %389 = vmatprep.subr.mxu0 0.0
        %390 = vmatpush1.msra.mxu0 0.0
        %391 = vmatprep.subr.mxu0 0.0
        %392 = vmatpush1.msra.mxu0 0.0
        %393 = vmatprep.mubr.f32.mxu0 0.0
        %394 = vmatmul.mubr.f32.gmra.mrb[0].mxu0 %v327
        %v395 = vpop.f32.mrb[0].mxu0
        %v396 = vadd.f32 %v323, %v395
        %v397 = vpop.f32.mrb[0].mxu0
        %398 = vdwg.mxu0
        %v399 = vmax.f32 %v396, 0.0
        %v400 = vld [vmem:[#allocation8] sm:$0xff]
        %v401 = vld [vmem:[#allocation8 + $0x8] sm:$0xff]
        %v402 = vld [vmem:[#allocation8 + $0x10] sm:$0xff]
        %v403 = vld [vmem:[#allocation8 + $0x18] sm:$0xff]
        %v404 = vld [vmem:[#allocation10] sm:$0xff]
        %v405 = vld [vmem:[#allocation10 + $0x8] sm:$0xff]
        %v406 = vld [vmem:[#allocation10 + $0x10] sm:$0xff]
        %v407 = vld [vmem:[#allocation10 + $0x18] sm:$0xff]
        %409 = vset.pattern.permute.xlu0 0
        %410 = vperm.xlu0 %409, %v404
        %v411 = vpop.permute.xlu0 %410
        %414 = vset.pattern.permute.xlu0 0
        %415 = vperm.xlu0 %414, %v405
        %v416 = vpop.permute.xlu0 %415
        %419 = vset.pattern.permute.xlu0 0
        %420 = vperm.xlu0 %419, %v406
        %v421 = vpop.permute.xlu0 %420
        %424 = vset.pattern.permute.xlu0 0
        %425 = vperm.xlu0 %424, %v407
        %v426 = vpop.permute.xlu0 %425
        %vm428 = vcmask 31744
        %v430 = vsel %vm428, %v400, 0
        %v433 = vsel %vm428, %v401, 0
        %v436 = vsel %vm428, %v402, 0
        %v439 = vsel %vm428, %v403, 0
        %vm441 = vcmask 1043456
        %v443 = vsel %vm441, %v399, 0
        %445 = vmatprep.subr.mxu0 0.0
        %446 = vmatpush1.msra.mxu0 %v443
        %447 = vmatprep.subr.mxu0 0.0
        %448 = vmatpush1.msra.mxu0 0.0
        %449 = vmatprep.subr.mxu0 0.0
        %450 = vmatpush1.msra.mxu0 0.0
        %451 = vmatprep.subr.mxu0 0.0
        %452 = vmatpush1.msra.mxu0 0.0
        %453 = vmatprep.subr.mxu0 0.0
        %454 = vmatpush1.msra.mxu0 0.0
        %455 = vmatprep.subr.mxu0 0.0
        %456 = vmatpush1.msra.mxu0 0.0
        %457 = vmatprep.subr.mxu0 0.0
        %458 = vmatpush1.msra.mxu0 0.0
        %459 = vmatprep.subr.mxu0 0.0
        %460 = vmatpush1.msra.mxu0 0.0
        %461 = vmatprep.subr.mxu0 0.0
        %462 = vmatpush1.msra.mxu0 0.0
        %463 = vmatprep.subr.mxu0 0.0
        %464 = vmatpush1.msra.mxu0 0.0
        %465 = vmatprep.subr.mxu0 0.0
        %466 = vmatpush1.msra.mxu0 0.0
        %467 = vmatprep.subr.mxu0 0.0
        %468 = vmatpush1.msra.mxu0 0.0
        %469 = vmatprep.subr.mxu0 0.0
        %470 = vmatpush1.msra.mxu0 0.0
        %471 = vmatprep.subr.mxu0 0.0
        %472 = vmatpush1.msra.mxu0 0.0
        %473 = vmatprep.subr.mxu0 0.0
        %474 = vmatpush1.msra.mxu0 0.0
        %475 = vmatprep.subr.mxu0 0.0
        %476 = vmatpush1.msra.mxu0 0.0
        %477 = vmatprep.subr.mxu0 0.0
        %478 = vmatpush1.msra.mxu0 0.0
        %479 = vmatprep.subr.mxu0 0.0
        %480 = vmatpush1.msra.mxu0 0.0
        %481 = vmatprep.subr.mxu0 0.0
        %482 = vmatpush1.msra.mxu0 0.0
        %483 = vmatprep.subr.mxu0 0.0
        %484 = vmatpush1.msra.mxu0 0.0
        %485 = vmatprep.subr.mxu0 0.0
        %486 = vmatpush1.msra.mxu0 0.0
        %487 = vmatprep.subr.mxu0 0.0
        %488 = vmatpush1.msra.mxu0 0.0
        %489 = vmatprep.subr.mxu0 0.0
        %490 = vmatpush1.msra.mxu0 0.0
        %491 = vmatprep.subr.mxu0 0.0
        %492 = vmatpush1.msra.mxu0 0.0
        %493 = vmatprep.subr.mxu0 0.0
        %494 = vmatpush1.msra.mxu0 0.0
        %495 = vmatprep.subr.mxu0 0.0
        %496 = vmatpush1.msra.mxu0 0.0
        %497 = vmatprep.subr.mxu0 0.0
        %498 = vmatpush1.msra.mxu0 0.0
        %499 = vmatprep.subr.mxu0 0.0
        %500 = vmatpush1.msra.mxu0 0.0
        %501 = vmatprep.subr.mxu0 0.0
        %502 = vmatpush1.msra.mxu0 0.0
        %503 = vmatprep.subr.mxu0 0.0
        %504 = vmatpush1.msra.mxu0 0.0
        %505 = vmatprep.subr.mxu0 0.0
        %506 = vmatpush1.msra.mxu0 0.0
        %507 = vmatprep.subr.mxu0 0.0
        %508 = vmatpush1.msra.mxu0 0.0
        %509 = vmatprep.mubr.f32.mxu0 0.0
        %510 = vmatmul.mubr.f32.gmra.mrb[0].mxu0 %v430
        %v511 = vpop.f32.mrb[0].mxu0
        %v512 = vadd.f32 %v411, %v511
        %v513 = vpop.f32.mrb[0].mxu0
        %514 = vmatprep.mubr.f32.mxu0 0.0
        %515 = vmatmul.mubr.f32.gmra.mrb[0].mxu0 %v433
        %v516 = vpop.f32.mrb[0].mxu0
        %v517 = vadd.f32 %v416, %v516
        %v518 = vpop.f32.mrb[0].mxu0
        %519 = vmatprep.mubr.f32.mxu0 0.0
        %520 = vmatmul.mubr.f32.gmra.mrb[0].mxu0 %v436
        %v521 = vpop.f32.mrb[0].mxu0
        %v522 = vadd.f32 %v421, %v521
        %v523 = vpop.f32.mrb[0].mxu0
        %524 = vmatprep.mubr.f32.mxu0 0.0
        %525 = vmatmul.mubr.f32.gmra.mrb[0].mxu0 %v439
        %v526 = vpop.f32.mrb[0].mxu0
        %v527 = vadd.f32 %v426, %v526
        %v528 = vpop.f32.mrb[0].mxu0
        %529 = vdwg.mxu0
        %v530 = vmul.f32 %v512, 0.5
        %v531 = vmul.f32 %v517, 0.5
        %v532 = vmul.f32 %v522, 0.5
        %v533 = vmul.f32 %v527, 0.5
        %v534 = vtanh.pop %v530
        %v535 = vtanh.pop %v531
        %v536 = vtanh.pop %v532
        %v537 = vtanh.pop %v533
        %v538 = vmul.f32 %v534, 0.5
        %v539 = vmul.f32 %v535, 0.5
        %v540 = vmul.f32 %v536, 0.5
        %v541 = vmul.f32 %v537, 0.5
        %v542 = vadd.f32 %v538, 0.5
        %v543 = vadd.f32 %v539, 0.5
        %v544 = vadd.f32 %v540, 0.5
        %v545 = vadd.f32 %v541, 0.5
        %v546 = vmul.f32 %v314, %v542
        %v547 = vmul.f32 %v315, %v543
        %v548 = vmul.f32 %v316, %v544
        %v549 = vmul.f32 %v317, %v545
        %550 = vst [vmem:[%s313] sm:$0xff] %v546
        %551 = vst [vmem:[%s313 + $0x8] sm:$0xff] %v547
        %552 = vst [vmem:[%s313 + $0x10] sm:$0xff] %v548
        %553 = vst [vmem:[%s313 + $0x18] sm:$0xff] %v549
        %s554 = sand.u32 %s158, 1
        %s555 = scalar_lea.sflag [#allocation4], %s554
        %s556 = sand.u32 %s158, 1
        %s557 = smul.addr %s556, 32
        %s558 = scalar_lea.vmem [#allocation11], %s557
        // Predicated region
        $region61: #{tpu_custom_call.1} parent=39 // pred_check
          %p559 = pneg %p168
        $region62: #{tpu_custom_call.1} parent=39 // pred_check_branch
          %561 = sbr.rel (%p559) target = $region64
        $region63: #{tpu_custom_call.1} parent=39 // pred_region
          %s563 = ssub.s32 512, 512
          %564 = vsyncadd %s555, %s563
          %s565 = smul.addr %s28, 8
          %s566 = sadd.s32 %s29, %s565
          %s567 = smul.addr %s566, 128
          %s568 = scalar_lea.hbm %s5, %s567
          %s569 = sshll.u32 %s558, 4
          %s570 = int_to_ptr.vmem [resolvable:$true] %s569
          %575 = dma.vmem_to_hbm [thread:$0]  %s570, 512, %s568, %s555, 128, 256, 8
        $region64: #{tpu_custom_call.1} parent=39 // pred_fallthru
          _
      $region40: #{tpu_custom_call.1} parent=5 // pred_fallthru
        _
      %p576 = scmp.le.s32.totalorder 2, %s19
      // Predicated region
      $region65: #{tpu_custom_call.1} parent=5 // pred_check
        %p577 = pneg %p576
      $region66: #{tpu_custom_call.1} parent=5 // pred_check_branch
        %579 = sbr.rel (%p577) target = $region68
      $region67: #{tpu_custom_call.1} parent=5 // pred_region
        %s580 = ssub.s32 %s19, 2
        // Predicated region
        $region69: #{tpu_custom_call.1} parent=67 // pred_check
          %p581 = pneg %p174
        $region70: #{tpu_custom_call.1} parent=67 // pred_check_branch
          %583 = sbr.rel (%p581) target = $region72
        $region71: #{tpu_custom_call.1} parent=67 // pred_region
          %s584 = sand.u32 %s159, 1
          %s585 = scalar_lea.sflag [#allocation4], %s584
          %s586 = sand.u32 %s159, 1
          %s587 = smul.addr %s586, 32
          %s588 = scalar_lea.vmem [#allocation11], %s587
          %589 = dma.done %s585, 512
        $region72: #{tpu_custom_call.1} parent=67 // pred_fallthru
          _
      $region68: #{tpu_custom_call.1} parent=5 // pred_fallthru
        _
    $region6: #{tpu_custom_call.1} parent=1 // loop_footer
      %s23 = sadd.s32 1, %s19
    $region7: #{tpu_custom_call.1} parent=1 // loop_footer_branch
      %18 = sbr.rel target = $region3
    $region8: #{tpu_custom_call.1} parent=1 // loop_exit
      _
    %590 = vsyncpa [#allocation3], 1
    %s591 = scalar_lea.sflag [#allocation3], 1
    %592 = vsyncpa %s591, 1
    %593 = vsyncpa [#allocation6], 1
    %594 = vsyncpa [#allocation9], 1
    %595 = vsyncpa [#allocation4], 1
    %s596 = scalar_lea.sflag [#allocation4], 1
    %597 = vsyncpa %s596, 1

</llo_original>
